<compile_context>
chip_gen: v5e
topology: v5e:2x2
jax: 0.10.0
libtpu: 0.0.40
codegen_flags: <defaults>
</compile_context>

<pallas_src>
import functools

import jax
import jax.numpy as jnp
from jax import lax
from jax.experimental import pallas as pl
from jax.experimental.pallas import tpu as pltpu

LANES = 128
SUBLANES = 8
ALIGN = SUBLANES * LANES              # 1024: kernel-prefix granularity
MAX_TILE_ROWS = 8192                  # (8192, 128) f32 tile = 4 MiB per input per buffer
NUM_SPLITS = 2                        # leading "parallel" axis: 2 TCs on v7x, sequential elsewhere
VMEM_LIMIT_BYTES = 48 * 1024 * 1024   # < 64 MiB v7x per-TC VMEM; ample headroom on v5e/v6e


def _bce_kernel(out_ref, tgt_ref, partial_ref, *, n_valid, blocks_per_core):
    """Logit-space BCE partial sums into a per-core resident (8,128) output block.

    out_ref:     (tile_rows, LANES) logits tile (native dtype).
    tgt_ref:     (tile_rows, LANES) target tile (native dtype).
    partial_ref: (SUBLANES, LANES) f32 output block for this core; resident
                 across the "arbitrary" reduction axis (same block index per core).
    n_valid:     static int, number of valid elements in the kernel's input slab.
    blocks_per_core: static int, reduction steps per core-split slice.
    """
    c = pl.program_id(0)   # core-split index ("parallel")
    i = pl.program_id(1)   # reduction step within this core's range ("arbitrary")

    @pl.when(i == 0)
    def _init():
        partial_ref[...] = jnp.zeros_like(partial_ref)

    x = out_ref[...].astype(jnp.float32)
    t = tgt_ref[...].astype(jnp.float32)

    # -t*log(sigmoid(x)) - (1-t)*log(1-sigmoid(x)) == max(x,0) - x*t + log1p(exp(-|x|))
    loss = jnp.maximum(x, 0.0) - x * t + jnp.log1p(jnp.exp(-jnp.abs(x)))

    rows, cols = loss.shape
    tile_elems = rows * cols
    # Logical (un-clamped) flat offset of this tile. Stays within int32 range
    # (wrapper asserts n accordingly).
    base = (c * blocks_per_core + i) * tile_elems
    needs_mask = base + tile_elems > n_valid   # only trailing / duplicated blocks

    @pl.when(jnp.logical_not(needs_mask))
    def _accum_full():
        # Fold rows onto the 8 sublanes: pure VPU adds, no cross-lane work.
        partial_ref[...] += jnp.sum(loss.reshape(-1, SUBLANES, LANES), axis=0)

    @pl.when(needs_mask)
    def _accum_masked():
        ridx = jax.lax.broadcasted_iota(jnp.int32, (rows, cols), 0)
        cidx = jax.lax.broadcasted_iota(jnp.int32, (rows, cols), 1)
        remaining = n_valid - base   # tile-local count; avoids absolute-index overflow
        mask = (ridx * cols + cidx) < remaining
        masked = jnp.where(mask, loss, 0.0)
        partial_ref[...] += jnp.sum(masked.reshape(-1, SUBLANES, LANES), axis=0)


def _bce_sum_plain(x, t):
    """Plain-JAX logit-space BCE sum (used only for a <=1023-element ragged tail)."""
    x = x.astype(jnp.float32)
    t = t.astype(jnp.float32)
    return jnp.sum(jnp.maximum(x, 0.0) - x * t + jnp.log1p(jnp.exp(-jnp.abs(x))))


@jax.jit
def bce_loss(output, target):
    """Mean binary cross-entropy of sigmoid(output) vs. target, any matching shapes."""
    assert output.shape == target.shape
    n = output.size
    assert 0 < n < 2**31 - NUM_SPLITS * MAX_TILE_ROWS * LANES, \
        "int32 flat-offset budget exceeded"

    # Keep native dtype (no upcast copy); cast per tile inside the kernel.
    out_flat = output.reshape(-1)
    tgt_flat = target.reshape(-1)

    # Kernel consumes the (8*128)-aligned prefix; tail handled in plain JAX.
    n_main = (n // ALIGN) * ALIGN
    total = jnp.float32(0.0)

    if n_main > 0:
        rows = n_main // LANES                    # multiple of 8
        tile_rows = min(MAX_TILE_ROWS, rows)      # multiple of 8, never exceeds the array
        total_blocks = pl.cdiv(rows, tile_rows)
        bpc = pl.cdiv(total_blocks, NUM_SPLITS)   # reduction steps per core slice

        if n_main == n:
            out2d = out_flat.reshape(rows, LANES)             # free reshape
            tgt2d = tgt_flat.reshape(rows, LANES)
        else:
            out2d = lax.slice(out_flat, (0,), (n_main,)).reshape(rows, LANES)
            tgt2d = lax.slice(tgt_flat, (0,), (n_main,)).reshape(rows, LANES)

        def in_map(c, i):
            # Clamp so the DMA never targets a block past the array; the kernel's
            # n_valid mask zeroes any duplicated / OOB-padded contribution.
            return (jnp.minimum(c * bpc + i, total_blocks - 1), 0)

        kernel = functools.partial(_bce_kernel, n_valid=n_main, blocks_per_core=bpc)

        partials = pl.pallas_call(
            kernel,
            out_shape=jax.ShapeDtypeStruct((NUM_SPLITS * SUBLANES, LANES), jnp.float32),
            grid=(NUM_SPLITS, bpc),
            in_specs=[
                pl.BlockSpec((tile_rows, LANES), in_map),
                pl.BlockSpec((tile_rows, LANES), in_map),
            ],
            out_specs=pl.BlockSpec((SUBLANES, LANES), lambda c, i: (c, 0)),
            compiler_params=pltpu.CompilerParams(
                dimension_semantics=("parallel", "arbitrary"),
                vmem_limit_bytes=VMEM_LIMIT_BYTES,
            ),
        )(out2d, tgt2d)
        total = jnp.sum(partials)

    if n_main < n:
        total = total + _bce_sum_plain(out_flat[n_main:], tgt_flat[n_main:])

    return total / jnp.float32(n)


def bce_loss_ref(output, target):
    """Pure-JAX reference matching the PyTorch module's forward."""
    s = jax.nn.sigmoid(output.astype(jnp.float32))
    t = target.astype(jnp.float32)
    loss = -t * jnp.log(s + 1e-15) - (1.0 - t) * jnp.log(1.0 - s + 1e-15)
    return jnp.mean(loss)


if __name__ == "__main__":
    key = jax.random.PRNGKey(0)
    k1, k2 = jax.random.split(key)
    # Small dense-prediction-style shape: (B, C, H, W)
    shape = (2, 4, 16, 16)
    logits = jax.random.normal(k1, shape, dtype=jnp.float32)
    targets = (jax.random.uniform(k2, shape) > 0.5).astype(jnp.float32)

    loss = bce_loss(logits, targets)
    jax.block_until_ready(loss)

    ref = bce_loss_ref(logits, targets)
    assert jnp.allclose(loss, ref, atol=1e-5, rtol=1e-4), (loss, ref)
    print("KERNEL_OK")
</pallas_src>

<mosaic_0001>
module attributes {stable_mosaic.version = 11 : i64} {
  func.func @_bce_kernel(%arg0: i32, %arg1: i32, %arg2: memref<16x128xf32, #tpu.memory_space<vmem>>, %arg3: memref<16x128xf32, #tpu.memory_space<vmem>>, %arg4: memref<8x128xf32, #tpu.memory_space<vmem>>) attributes {dimension_semantics = [#tpu.dimension_semantics<parallel>, #tpu.dimension_semantics<arbitrary>], iteration_bounds = array<i64: 2, 1>, scalar_prefetch = 0 : i64, scratch_operands = 0 : i64, tpu.core_type = #tpu.core_type<tc>, window_params = [{transform_indices = @transform_0, window_bounds = array<i64: 16, 128>}, {transform_indices = @transform_1, window_bounds = array<i64: 16, 128>}, {transform_indices = @transform_2, window_bounds = array<i64: 8, 128>}]} {
    %c0_i32 = arith.constant 0 : i32
    %0 = arith.cmpi eq, %arg1, %c0_i32 : i32
    %1 = arith.extui %0 : i1 to i32
    %c0_i32_0 = arith.constant 0 : i32
    %2 = arith.cmpi ne, %1, %c0_i32_0 : i32
    scf.if %2 {
      %cst_9 = arith.constant 0.000000e+00 : f32
      %25 = vector.broadcast %cst_9 : f32 to vector<8x128xf32>
      %c0_10 = arith.constant 0 : index
      %c0_11 = arith.constant 0 : index
      %26 = vector.load %arg4[%c0_10, %c0_11] : memref<8x128xf32, #tpu.memory_space<vmem>>, vector<8x128xf32>
      tpu.vector_store %arg4[%c0_10, %c0_11], %25 {strides = array<i32>} : memref<8x128xf32, #tpu.memory_space<vmem>>, vector<8x128xf32>,
    } else {
    }
    %c0 = arith.constant 0 : index
    %c0_1 = arith.constant 0 : index
    %3 = vector.load %arg2[%c0, %c0_1] : memref<16x128xf32, #tpu.memory_space<vmem>>, vector<16x128xf32>
    %c0_2 = arith.constant 0 : index
    %c0_3 = arith.constant 0 : index
    %4 = vector.load %arg3[%c0_2, %c0_3] : memref<16x128xf32, #tpu.memory_space<vmem>>, vector<16x128xf32>
    %cst = arith.constant 0.000000e+00 : f32
    %5 = vector.broadcast %cst : f32 to vector<16x128xf32>
    %6 = arith.maximumf %3, %5 : vector<16x128xf32>
    %7 = arith.mulf %3, %4 : vector<16x128xf32>
    %8 = arith.subf %6, %7 : vector<16x128xf32>
    %9 = math.absf %3 : vector<16x128xf32>
    %cst_4 = arith.constant 0.000000e+00 : f32
    %10 = vector.broadcast %cst_4 : f32 to vector<16x128xf32>
    %11 = arith.subf %10, %9 : vector<16x128xf32>
    %12 = math.exp %11 : vector<16x128xf32>
    %13 = math.log1p %12 : vector<16x128xf32>
    %14 = arith.addf %8, %13 : vector<16x128xf32>
    %c1_i32 = arith.constant 1 : i32
    %15 = arith.muli %arg0, %c1_i32 : i32
    %16 = arith.addi %15, %arg1 : i32
    %c2048_i32 = arith.constant 2048 : i32
    %17 = arith.muli %16, %c2048_i32 : i32
    %c2048_i32_5 = arith.constant 2048 : i32
    %18 = arith.addi %17, %c2048_i32_5 : i32
    %c2048_i32_6 = arith.constant 2048 : i32
    %19 = arith.cmpi sgt, %18, %c2048_i32_6 : i32
    %true = arith.constant true
    %20 = arith.xori %19, %true : i1
    %21 = arith.extui %20 : i1 to i32
    %c0_i32_7 = arith.constant 0 : i32
    %22 = arith.cmpi ne, %21, %c0_i32_7 : i32
    scf.if %22 {
      %c0_9 = arith.constant 0 : index
      %c0_10 = arith.constant 0 : index
      %25 = vector.load %arg4[%c0_9, %c0_10] : memref<8x128xf32, #tpu.memory_space<vmem>>, vector<8x128xf32>
      %26 = vector.shape_cast %14 : vector<16x128xf32> to vector<2x8x128xf32>
      %cst_11 = arith.constant dense<0.000000e+00> : vector<8x128xf32>
      %27 = vector.multi_reduction <add>, %26, %cst_11 [0] : vector<2x8x128xf32> to vector<8x128xf32>
      %28 = arith.addf %25, %27 : vector<8x128xf32>
      %c0_12 = arith.constant 0 : index
      %c0_13 = arith.constant 0 : index
      %29 = vector.load %arg4[%c0_12, %c0_13] : memref<8x128xf32, #tpu.memory_space<vmem>>, vector<8x128xf32>
      tpu.vector_store %arg4[%c0_12, %c0_13], %28 {strides = array<i32>} : memref<8x128xf32, #tpu.memory_space<vmem>>, vector<8x128xf32>,
    } else {
    }
    %23 = arith.extui %19 : i1 to i32
    %c0_i32_8 = arith.constant 0 : i32
    %24 = arith.cmpi ne, %23, %c0_i32_8 : i32
    scf.if %24 {
      %25 = tpu.iota {dimensions = array<i32: 0>} : vector<16x128xi32>
      %26 = tpu.iota {dimensions = array<i32: 1>} : vector<16x128xi32>
      %c2048_i32_9 = arith.constant 2048 : i32
      %27 = arith.subi %c2048_i32_9, %17 : i32
      %c128_i32 = arith.constant 128 : i32
      %28 = vector.broadcast %c128_i32 : i32 to vector<16x128xi32>
      %29 = arith.muli %25, %28 : vector<16x128xi32>
      %30 = arith.addi %29, %26 : vector<16x128xi32>
      %31 = vector.broadcast %27 : i32 to vector<16x128xi32>
      %32 = arith.cmpi slt, %30, %31 : vector<16x128xi32>
      %cst_10 = arith.constant 0.000000e+00 : f32
      %33 = vector.broadcast %cst_10 : f32 to vector<16x128xf32>
      %34 = arith.select %32, %14, %33 : vector<16x128xi1>, vector<16x128xf32>
      %c0_11 = arith.constant 0 : index
      %c0_12 = arith.constant 0 : index
      %35 = vector.load %arg4[%c0_11, %c0_12] : memref<8x128xf32, #tpu.memory_space<vmem>>, vector<8x128xf32>
      %36 = vector.shape_cast %34 : vector<16x128xf32> to vector<2x8x128xf32>
      %cst_13 = arith.constant dense<0.000000e+00> : vector<8x128xf32>
      %37 = vector.multi_reduction <add>, %36, %cst_13 [0] : vector<2x8x128xf32> to vector<8x128xf32>
      %38 = arith.addf %35, %37 : vector<8x128xf32>
      %c0_14 = arith.constant 0 : index
      %c0_15 = arith.constant 0 : index
      %39 = vector.load %arg4[%c0_14, %c0_15] : memref<8x128xf32, #tpu.memory_space<vmem>>, vector<8x128xf32>
      tpu.vector_store %arg4[%c0_14, %c0_15], %38 {strides = array<i32>} : memref<8x128xf32, #tpu.memory_space<vmem>>, vector<8x128xf32>,
    } else {
    }
    return
  }
  func.func @transform_0(%arg0: i32, %arg1: i32) -> (i32, i32) {
    %c1_i32 = arith.constant 1 : i32
    %0 = arith.muli %arg0, %c1_i32 : i32
    %1 = arith.addi %0, %arg1 : i32
    %c0_i32 = arith.constant 0 : i32
    %2 = arith.minsi %1, %c0_i32 : i32
    %c0_i32_0 = arith.constant 0 : i32
    %c0_i32_1 = arith.constant 0 : i32
    return %2, %c0_i32_0 : i32, i32
  }
  func.func @transform_1(%arg0: i32, %arg1: i32) -> (i32, i32) {
    %c1_i32 = arith.constant 1 : i32
    %0 = arith.muli %arg0, %c1_i32 : i32
    %1 = arith.addi %0, %arg1 : i32
    %c0_i32 = arith.constant 0 : i32
    %2 = arith.minsi %1, %c0_i32 : i32
    %c0_i32_0 = arith.constant 0 : i32
    %c0_i32_1 = arith.constant 0 : i32
    return %2, %c0_i32_0 : i32, i32
  }
  func.func @transform_2(%arg0: i32, %arg1: i32) -> (i32, i32) {
    %c0_i32 = arith.constant 0 : i32
    %c0_i32_0 = arith.constant 0 : i32
    return %arg0, %c0_i32 : i32, i32
  }
}

</mosaic_0001>

<llo_original>
// kernel: bce_loss.1
$region0: #{bce_loss.1}
  #allocation0 [shape = 'u32[]', space=smem, size = 0x4, offset = 0x4, fixed_abs, tag = 'smem constant byte address 0x4 - core index']
  #allocation1 [shape = 'u32[72,128]{1,0:T(1,128)}', space=vmem, size = 0x9000, scoped, tag = 'internal scratch']
  %s0 = inlined_call_operand.vmem [shape: f32[16,128], index: 0, kind: input, shape index: {}]
  %s1 = inlined_call_operand.vmem [shape: f32[16,128], index: 1, kind: input, shape index: {}]
  %s2 = inlined_call_operand.vmem [shape: f32[16,128], index: 2, kind: output, shape index: {}]
  %s3 = sld [smem:[#allocation0]]
  $region53: #{bce_loss.1} parent=0
    _
  %s5 = ssub.s32 1, %s3
  %s6 = scalar_select 0, %s5, %s3
  loop: start=0, step=1, limit=4
  $region2: #{bce_loss.1} parent=0 // loop_pre_header
    _
  $region3: #{bce_loss.1} parent=0 // loop_header
    %s8 = sphi 0, %s12
    %p9 = scmp.ge.s32.totalorder %s8, 4
    %s15 = sphi 0, %s27
    %s16 = sphi 0, %s23
    %s17 = sphi 0, %s15
    %s18 = sphi 0, %s16
    %s19 = sphi 0, %s17
    %s20 = sphi 0, %s18
    %s36 = sphi 0, %s38
    %s39 = sphi 0, %s36
    %s40 = sphi 0, %s39
    %s56 = sphi 0, %s40
    %s68 = sphi 0, %s70
    %s71 = sphi 0, %s68
    %s72 = sphi 0, %s71
    %s88 = sphi 0, %s72
    %s94 = sphi 0, %s96
    %s97 = sphi 0, %s94
    %s98 = sphi 0, %s97
    %s114 = sphi 0, %s98
  $region4: #{bce_loss.1} parent=0 // loop_header_branch
    %11 = sbr.rel (%p9) target = $region8
  $region5: #{bce_loss.1} parent=0 // loop_body
    %s13 = ssub.s32 %s8, 1
    %s14 = ssub.s32 %s8, 2
    %s21 = sadd.s32 1, %s16
    %p22 = scmp.ge.s32.totalorder %s21, 1
    %s23 = scalar_select %p22, 0, %s21
    %s24 = sadd.s32 1, %s15
    %s25 = scalar_select %p22, %s24, %s15
    %p26 = scmp.ge.s32.totalorder %s25, 2
    %s27 = scalar_select %p26, 0, %s25
    %s28 = sadd.s32 %s15, %s16
    %p29 = scmp.lt.s32.totalorder %s28, 0
    %s30 = scalar_select %p29, %s28, 0
    %s31 = sadd.s32 %s27, %s23
    %p32 = scmp.lt.s32.totalorder %s31, 0
    %s33 = scalar_select %p32, %s31, 0
    %s34 = ssub.s32 %s30, %s33
    %p35 = scmp.eq.s32.totalorder %s34, 0
    %s37 = sadd.s32 %s36, 1
    %s38 = scalar_select %p35, %s36, %s37
    %p41 = pneg %p35
    %p42 = scmp.eq.s32.totalorder %s8, 1
    %p43 = por %p41, %p42
    %p44 = scmp.ne.s32.totalorder %s36, %s39
    %p45 = scmp.eq.s32.totalorder %s8, 0
    %p46 = por %p44, %p45
    %p47 = scmp.ne.s32.totalorder %s36, %s39
    %p48 = scmp.eq.s32.totalorder %s13, 1
    %p49 = por %p47, %p48
    %p50 = scmp.ne.s32.totalorder %s39, %s40
    %p51 = scmp.eq.s32.totalorder %s13, 0
    %p52 = por %p50, %p51
    %p53 = scmp.ne.s32.totalorder %s39, %s40
    %p54 = scmp.eq.s32.totalorder %s14, 1
    %p55 = por %p53, %p54
    %p57 = scmp.ne.s32.totalorder %s40, %s56
    %p58 = scmp.eq.s32.totalorder %s14, 0
    %p59 = por %p57, %p58
    %s60 = sadd.s32 %s15, %s16
    %p61 = scmp.lt.s32.totalorder %s60, 0
    %s62 = scalar_select %p61, %s60, 0
    %s63 = sadd.s32 %s27, %s23
    %p64 = scmp.lt.s32.totalorder %s63, 0
    %s65 = scalar_select %p64, %s63, 0
    %s66 = ssub.s32 %s62, %s65
    %p67 = scmp.eq.s32.totalorder %s66, 0
    %s69 = sadd.s32 %s68, 1
    %s70 = scalar_select %p67, %s68, %s69
    %p73 = pneg %p67
    %p74 = scmp.eq.s32.totalorder %s8, 1
    %p75 = por %p73, %p74
    %p76 = scmp.ne.s32.totalorder %s68, %s71
    %p77 = scmp.eq.s32.totalorder %s8, 0
    %p78 = por %p76, %p77
    %p79 = scmp.ne.s32.totalorder %s68, %s71
    %p80 = scmp.eq.s32.totalorder %s13, 1
    %p81 = por %p79, %p80
    %p82 = scmp.ne.s32.totalorder %s71, %s72
    %p83 = scmp.eq.s32.totalorder %s13, 0
    %p84 = por %p82, %p83
    %p85 = scmp.ne.s32.totalorder %s71, %s72
    %p86 = scmp.eq.s32.totalorder %s14, 1
    %p87 = por %p85, %p86
    %p89 = scmp.ne.s32.totalorder %s72, %s88
    %p90 = scmp.eq.s32.totalorder %s14, 0
    %p91 = por %p89, %p90
    %s92 = ssub.s32 %s15, %s27
    %p93 = scmp.eq.s32.totalorder %s92, 0
    %s95 = sadd.s32 %s94, 1
    %s96 = scalar_select %p93, %s94, %s95
    %p99 = pneg %p93
    %p100 = scmp.eq.s32.totalorder %s8, 1
    %p101 = por %p99, %p100
    %p102 = scmp.ne.s32.totalorder %s94, %s97
    %p103 = scmp.eq.s32.totalorder %s8, 0
    %p104 = por %p102, %p103
    %p105 = scmp.ne.s32.totalorder %s94, %s97
    %p106 = scmp.eq.s32.totalorder %s13, 1
    %p107 = por %p105, %p106
    %p108 = scmp.ne.s32.totalorder %s97, %s98
    %p109 = scmp.eq.s32.totalorder %s13, 0
    %p110 = por %p108, %p109
    %p111 = scmp.ne.s32.totalorder %s97, %s98
    %p112 = scmp.eq.s32.totalorder %s14, 1
    %p113 = por %p111, %p112
    %p115 = scmp.ne.s32.totalorder %s98, %s114
    %p116 = scmp.eq.s32.totalorder %s14, 0
    %p117 = por %p115, %p116
    %p118 = scmp.le.s32.totalorder 1, %s8
    %p119 = scmp.lt.s32.totalorder %s8, 3
    %p120 = pnand %p118, %p119
    %p121 = pneg %p120
    // Predicated region
    $region9: #{bce_loss.1} parent=5 // pred_check
      _
    $region10: #{bce_loss.1} parent=5 // pred_check_branch
      %123 = sbr.rel (%p120) target = $region12
    $region11: #{bce_loss.1} parent=5 // pred_region
      %s124 = ssub.s32 %s8, 1
    $region12: #{bce_loss.1} parent=5 // pred_fallthru
      _
    %p125 = scmp.lt.s32.totalorder %s8, 2
    // Predicated region
    $region13: #{bce_loss.1} parent=5 // pred_check
      %p126 = pneg %p125
    $region14: #{bce_loss.1} parent=5 // pred_check_branch
      %128 = sbr.rel (%p126) target = $region16
    $region15: #{bce_loss.1} parent=5 // pred_region
      // Predicated region
      $region17: #{bce_loss.1} parent=15 // pred_check
        %p129 = pneg %p46
      $region18: #{bce_loss.1} parent=15 // pred_check_branch
        %131 = sbr.rel (%p129) target = $region20
      $region19: #{bce_loss.1} parent=15 // pred_region
        %s132 = sadd.s32 %s15, %s16
        %p133 = scmp.lt.s32.totalorder %s132, 0
        %s134 = scalar_select %p133, %s132, 0
        %s135 = smul.u32 2, %s134
        %p136 = scmp.lt.s32.totalorder %s135, 1
        %s137 = scalar_select %p136, %s135, 1
        %s138 = smul.addr %s137, 8
        %s139 = scalar_lea.vmem %s0, %s138
        %s140 = sadd.s32 %s15, %s16
        %p141 = scmp.lt.s32.totalorder %s140, 0
        %s142 = scalar_select %p141, %s140, 0
        %s143 = smul.u32 2, %s142
      $region20: #{bce_loss.1} parent=15 // pred_fallthru
        _
      // Predicated region
      $region21: #{bce_loss.1} parent=15 // pred_check
        %p144 = pneg %p78
      $region22: #{bce_loss.1} parent=15 // pred_check_branch
        %146 = sbr.rel (%p144) target = $region24
      $region23: #{bce_loss.1} parent=15 // pred_region
        %s147 = sadd.s32 %s15, %s16
        %p148 = scmp.lt.s32.totalorder %s147, 0
        %s149 = scalar_select %p148, %s147, 0
        %s150 = smul.u32 2, %s149
        %p151 = scmp.lt.s32.totalorder %s150, 1
        %s152 = scalar_select %p151, %s150, 1
        %s153 = smul.addr %s152, 8
        %s154 = scalar_lea.vmem %s1, %s153
        %s155 = sadd.s32 %s15, %s16
        %p156 = scmp.lt.s32.totalorder %s155, 0
        %s157 = scalar_select %p156, %s155, 0
        %s158 = smul.u32 2, %s157
      $region24: #{bce_loss.1} parent=15 // pred_fallthru
        _
    $region16: #{bce_loss.1} parent=5 // pred_fallthru
      _
    %p159 = scmp.le.s32.totalorder 1, %s8
    %p160 = scmp.lt.s32.totalorder %s8, 3
    %p161 = pnand %p159, %p160
    %p162 = pneg %p161
    // Predicated region
    $region25: #{bce_loss.1} parent=5 // pred_check
      _
    $region26: #{bce_loss.1} parent=5 // pred_check_branch
      %164 = sbr.rel (%p161) target = $region28
    $region27: #{bce_loss.1} parent=5 // pred_region
      %s165 = ssub.s32 %s8, 1
      %s166 = sadd.s32 %s17, %s18
      %p167 = scmp.lt.s32.totalorder %s166, 0
      %s168 = scalar_select %p167, %s166, 0
      %s169 = smul.u32 2, %s168
      %p170 = scmp.lt.s32.totalorder %s169, 1
      %s171 = scalar_select %p170, %s169, 1
      %s172 = smul.addr %s171, 8
      %s173 = scalar_lea.vmem %s0, %s172
      %p174 = pneg %p52
      %p175 = pneg %p49
      %s176 = sadd.s32 %s17, %s18
      %p177 = scmp.lt.s32.totalorder %s176, 0
      %s178 = scalar_select %p177, %s176, 0
      %s179 = smul.u32 2, %s178
      %p180 = scmp.lt.s32.totalorder %s179, 1
      %s181 = scalar_select %p180, %s179, 1
      %s182 = smul.addr %s181, 8
      %s183 = scalar_lea.vmem %s1, %s182
      %p184 = pneg %p84
      %p185 = pneg %p81
      %p186 = pneg %p110
      %p187 = pneg %p107
      %p188 = scmp.lt.s32.totalorder %s17, 1
      %s189 = scalar_select %p188, %s17, 1
      %s190 = smul.addr %s189, 8
      %s191 = scalar_lea.vmem %s2, %s190
      %s192 = sadd.s32 %s17, %s18
      %p193 = scmp.lt.s32.totalorder %s192, 0
      %s194 = scalar_select %p193, %s192, 0
      %s195 = smul.u32 2, %s194
      %p196 = scmp.lt.s32.totalorder %s195, 1
      %s197 = scalar_select %p196, %s195, 1
      %s198 = smul.addr %s197, 8
      %s199 = scalar_lea.vmem %s0, %s198
      %s200 = sadd.s32 %s17, %s18
      %p201 = scmp.lt.s32.totalorder %s200, 0
      %s202 = scalar_select %p201, %s200, 0
      %s203 = smul.u32 2, %s202
      %s204 = sadd.s32 %s17, %s18
      %p205 = scmp.lt.s32.totalorder %s204, 0
      %s206 = scalar_select %p205, %s204, 0
      %s207 = smul.u32 2, %s206
      %p208 = scmp.lt.s32.totalorder %s207, 1
      %s209 = scalar_select %p208, %s207, 1
      %s210 = smul.addr %s209, 8
      %s211 = scalar_lea.vmem %s1, %s210
      %s212 = sadd.s32 %s17, %s18
      %p213 = scmp.lt.s32.totalorder %s212, 0
      %s214 = scalar_select %p213, %s212, 0
      %s215 = smul.u32 2, %s214
      %p216 = scmp.lt.s32.totalorder %s17, 1
      %s217 = scalar_select %p216, %s17, 1
      %s218 = smul.addr %s217, 8
      %s219 = scalar_lea.vmem %s2, %s218
      %p220 = scmp.eq.s32.totalorder %s18, 0
      // Predicated region
      $region29: #{bce_loss.1} parent=27 // pred_check
        %p221 = pneg %p220
      $region30: #{bce_loss.1} parent=27 // pred_check_branch
        %223 = sbr.rel (%p221) target = $region32
      $region31: #{bce_loss.1} parent=27 // pred_region
        %224 = vst [vmem:[%s219] sm:$0xff] 0.0
      $region32: #{bce_loss.1} parent=27 // pred_fallthru
        _
      %v225 = vld [vmem:[%s199] sm:$0xff]
      %v226 = vld [vmem:[%s199 + $0x8] sm:$0xff]
      %v227 = vld [vmem:[%s211] sm:$0xff]
      %v228 = vld [vmem:[%s211 + $0x8] sm:$0xff]
      %v229 = vmax.f32 %v225, 0.0
      %v230 = vmax.f32 %v226, 0.0
      %v231 = vmul.f32 %v225, %v227
      %v232 = vmul.f32 %v226, %v228
      %v233 = vsub.f32 %v229, %v231
      %v234 = vsub.f32 %v230, %v232
      %v235 = vand.u32 2147483647, %v225
      %v236 = vand.u32 2147483647, %v226
      %v237 = vsub.f32 0.0, %v235
      %v238 = vsub.f32 0.0, %v236
      %v239 = vmul.f32 %v237, 1.442695
      %v240 = vpow.pop %v239
      %v241 = vmul.f32 %v238, 1.442695
      %v242 = vpow.pop %v241
      %v243 = vadd.f32 %v240, 1.0
      %v244 = vlog2.pop %v243
      %v245 = vmul.f32 %v244, 0.6931472
      %v246 = vmul.f32 -0.5, %v240
      %v247 = vadd.f32 %v246, 1.0
      %v248 = vmul.f32 %v247, %v240
      %v249 = vand.u32 2147483647, %v240
      %vm250 = vcmp.lt.f32.partialorder %v249, 0.0004427343
      %v251 = vsel %vm250, %v248, %v245
      %v252 = vadd.f32 %v242, 1.0
      %v253 = vlog2.pop %v252
      %v254 = vmul.f32 %v253, 0.6931472
      %v255 = vmul.f32 -0.5, %v242
      %v256 = vadd.f32 %v255, 1.0
      %v257 = vmul.f32 %v256, %v242
      %v258 = vand.u32 2147483647, %v242
      %vm259 = vcmp.lt.f32.partialorder %v258, 0.0004427343
      %v260 = vsel %vm259, %v257, %v254
      %v261 = vadd.f32 %v233, %v251
      %v262 = vadd.f32 %v234, %v260
      %s263 = sadd.s32 %s17, %s18
      %s264 = smul.u32 %s263, 2048
      %s265 = sadd.s32 %s264, 2048
      %p266 = scmp.gt.s32.totalorder %s265, 2048
      %p267 = scmp.le.s32.totalorder %s265, 2048
      // Predicated region
      $region33: #{bce_loss.1} parent=27 // pred_check
        %p268 = pneg %p267
      $region34: #{bce_loss.1} parent=27 // pred_check_branch
        %270 = sbr.rel (%p268) target = $region36
      $region35: #{bce_loss.1} parent=27 // pred_region
        %v271 = vld [vmem:[%s219] sm:$0xff]
        %v272 = vadd.f32 %v261, %v262
        %v273 = vadd.f32 %v271, %v272
        %274 = vst [vmem:[%s219] sm:$0xff] %v273
      $region36: #{bce_loss.1} parent=27 // pred_fallthru
        _
      // Predicated region
      $region37: #{bce_loss.1} parent=27 // pred_check
        %p275 = pneg %p266
      $region38: #{bce_loss.1} parent=27 // pred_check_branch
        %277 = sbr.rel (%p275) target = $region40
      $region39: #{bce_loss.1} parent=27 // pred_region
        %v278 = vlaneseq
        %v279 = vshrl.u32 %v278, 7
        %v280 = vadd.s32 %v279, 8
        %v281 = vlaneseq
        %v282 = vand.u32 %v281, 127
        %s283 = ssub.s32 2048, %s264
        %v284 = vmul.u32 %v279, 128
        %v285 = vmul.u32 %v280, 128
        %v286 = vadd.s32 %v284, %v282
        %v287 = vadd.s32 %v285, %v282
        %v288 = vstv %s283
        %vm289 = vcmp.lt.s32.totalorder %v286, %v288
        %vm290 = vcmp.lt.s32.totalorder %v287, %v288
        %v291 = vsel %vm289, %v261, 0.0
        %v292 = vsel %vm290, %v262, 0.0
        %v293 = vld [vmem:[%s219] sm:$0xff]
        %v294 = vadd.f32 %v291, %v292
        %v295 = vadd.f32 %v293, %v294
        %296 = vst [vmem:[%s219] sm:$0xff] %v295
      $region40: #{bce_loss.1} parent=27 // pred_fallthru
        _
      %p297 = scmp.lt.s32.totalorder %s17, 1
      %s298 = scalar_select %p297, %s17, 1
      %s299 = smul.addr %s298, 8
      %s300 = scalar_lea.vmem %s2, %s299
      // Predicated region
      $region41: #{bce_loss.1} parent=27 // pred_check
        %p301 = pneg %p107
      $region42: #{bce_loss.1} parent=27 // pred_check_branch
        %303 = sbr.rel (%p301) target = $region44
      $region43: #{bce_loss.1} parent=27 // pred_region
        _
      $region44: #{bce_loss.1} parent=27 // pred_fallthru
        _
    $region28: #{bce_loss.1} parent=5 // pred_fallthru
      _
    %p304 = scmp.le.s32.totalorder 2, %s8
    // Predicated region
    $region45: #{bce_loss.1} parent=5 // pred_check
      %p305 = pneg %p304
    $region46: #{bce_loss.1} parent=5 // pred_check_branch
      %307 = sbr.rel (%p305) target = $region48
    $region47: #{bce_loss.1} parent=5 // pred_region
      %s308 = ssub.s32 %s8, 2
      // Predicated region
      $region49: #{bce_loss.1} parent=47 // pred_check
        %p309 = pneg %p113
      $region50: #{bce_loss.1} parent=47 // pred_check_branch
        %311 = sbr.rel (%p309) target = $region52
      $region51: #{bce_loss.1} parent=47 // pred_region
        %p312 = scmp.lt.s32.totalorder %s19, 1
        %s313 = scalar_select %p312, %s19, 1
        %s314 = smul.addr %s313, 8
        %s315 = scalar_lea.vmem %s2, %s314
      $region52: #{bce_loss.1} parent=47 // pred_fallthru
        _
    $region48: #{bce_loss.1} parent=5 // pred_fallthru
      _
  $region6: #{bce_loss.1} parent=0 // loop_footer
    %s12 = sadd.s32 1, %s8
  $region7: #{bce_loss.1} parent=0 // loop_footer_branch
    %7 = sbr.rel target = $region3
  $region8: #{bce_loss.1} parent=0 // loop_exit
    _

</llo_original>
